<compile_context>
chip_gen: v7x
topology: tpu7x:2x2x1
jax: 0.10.0
libtpu: 0.0.40
codegen_flags: <defaults>
</compile_context>

<pallas_src>
import jax
import jax.numpy as jnp
from jax.experimental import pallas as pl
from jax.experimental.pallas import tpu as pltpu


# ---------------------------------------------------------------------------
# Fused detector kernel: conv1 + conv2 + neck + (cls|reg) head, one grid step
# per batch element.  Four MXU dots, element-wise glue, one store.  No loops,
# no reshapes, no per-row slicing.
# ---------------------------------------------------------------------------
def _detector_kernel(x1_ref, mask_ref, w1_ref, b1_ref, w2_ref, b2_ref,
                     wn_ref, bn_ref, wh_ref, bh_ref, o_ref):
    # conv1 (3x3 / stride 2 / pad 1) evaluated at every conv2 im2col slot:
    # (M2, 16*9*Cin) @ block-diag (16*9*Cin, 16*C1) -> conv2 im2col (M2, 16*C1).
    h = jnp.dot(x1_ref[...], w1_ref[...], preferred_element_type=jnp.float32)
    # bias + ReLU, then zero the slots that correspond to conv2's spatial padding
    # (they must be exactly 0, not relu(b1)).
    x2 = jnp.maximum(h + b1_ref[...], 0.0) * mask_ref[...]          # (M2, 128) f32

    # conv2 (3x3 / stride 2 / pad 1) + ReLU: single full-K MXU contraction.
    h = jnp.dot(x2.astype(jnp.bfloat16), w2_ref[...],
                preferred_element_type=jnp.float32)
    y2 = jnp.maximum(h + b2_ref[...], 0.0)                          # (M2, C2)

    # neck 1x1 conv + ReLU
    h = jnp.dot(y2.astype(jnp.bfloat16), wn_ref[...],
                preferred_element_type=jnp.float32)
    y3 = jnp.maximum(h + bn_ref[...], 0.0)                          # (M2, Cn)

    # separate detection head: cls and reg 1x1 convs fused along N
    h = jnp.dot(y3.astype(jnp.bfloat16), wh_ref[...],
                preferred_element_type=jnp.float32)
    o_ref[...] = (h + bh_ref[...]).astype(o_ref.dtype)              # (M2, Ncls+4)


# ---------------------------------------------------------------------------
# Wrapper-side packing (runs once per forward, on the raw input only)
# ---------------------------------------------------------------------------
def _conv1_patch_slots(x_nhwc):
    """im2col of the fused conv1-inside-conv2 receptive field.

    For conv2 output position q=(a, c) and slot k = (2*da+dc)*4 + (2*dh+dw)
    (da,dc,dh,dw in {0,1}), lane block k of row q holds the 3x3/stride-2 conv1
    patch at conv1 output position (i, j) = (2*(a+da)+dh-1, 2*(c+dc)+dw-1),
    or arbitrary data if that position is outside the conv1 output grid
    (masked to zero in the kernel via `valid`).

    Returns:
      slots: (B, Ho2*Wo2, 16 * 9*Cin)
      valid: (Ho2*Wo2, 16)  float32 0/1 per (row, slot)
    """
    B, H, W, Cin = x_nhwc.shape
    Ho, Wo = H // 2, W // 2           # conv1 output grid
    Ho2, Wo2 = Ho // 2, Wo // 2       # conv2 output grid

    xp = jnp.pad(x_nhwc, ((0, 0), (1, 1), (1, 1), (0, 0)))
    # 3x3 / stride-2 patches of x at every conv1 output position (kh,kw,ci order)
    P = jnp.concatenate(
        [xp[:, kh:kh + 2 * Ho:2, kw:kw + 2 * Wo:2, :]
         for kh in range(3) for kw in range(3)], axis=-1)            # (B,Ho,Wo,9Cin)
    Pp = jnp.pad(P, ((0, 0), (1, 1), (1, 1), (0, 0)))                # (B,Ho+2,Wo+2,9Cin)
    Vp = jnp.pad(jnp.ones((Ho, Wo), jnp.float32), ((1, 1), (1, 1)))  # (Ho+2,Wo+2)

    slot_list, valid_list = [], []
    for da in range(2):
        for dc in range(2):
            for dh in range(2):
                for dw in range(2):
                    kh, kw = 2 * da + dh, 2 * dc + dw
                    slot_list.append(
                        Pp[:, kh::2, kw::2, :][:, :Ho2, :Wo2, :])    # (B,Ho2,Wo2,9Cin)
                    valid_list.append(Vp[kh::2, kw::2][:Ho2, :Wo2])  # (Ho2,Wo2)

    slots = jnp.concatenate(slot_list, axis=-1)                      # (B,Ho2,Wo2,16*9Cin)
    slots = slots.reshape(B, Ho2 * Wo2, 16 * 9 * Cin)
    valid = jnp.stack(valid_list, axis=-1).reshape(Ho2 * Wo2, 16)
    return slots, valid


def _s2d_conv_weight(w):
    """(3,3,Cin,Cout) -> (16*Cin, Cout).

    Lane block k = (2*da+dc)*4 + (2*dh+dw) holds w[2*da+dh, 2*dc+dw]
    (zero when the tap falls outside the 3x3 kernel).  Matches the slot layout
    produced by _conv1_patch_slots.
    """
    _, _, cin, cout = w.shape
    out = jnp.zeros((16 * cin, cout), w.dtype)
    for da in range(2):
        for dc in range(2):
            for dh in range(2):
                for dw in range(2):
                    kh, kw = 2 * da + dh, 2 * dc + dw
                    if kh > 2 or kw > 2:
                        continue
                    k = (2 * da + dc) * 4 + (2 * dh + dw)
                    out = out.at[k * cin:(k + 1) * cin, :].set(w[kh, kw])
    return out


# ---------------------------------------------------------------------------
# BuildDetector (synthetic instantiation)
# ---------------------------------------------------------------------------
def init_detector_params(key, in_ch=4, c1=8, c2=16, neck_ch=16, num_classes=8):
    ks = jax.random.split(key, 10)
    scale = 0.1

    def w(k, shape):
        return scale * jax.random.normal(k, shape, dtype=jnp.float32)

    return {
        # backbone
        "bb1_w": w(ks[0], (3, 3, in_ch, c1)), "bb1_b": w(ks[1], (c1,)),
        "bb2_w": w(ks[2], (3, 3, c1, c2)), "bb2_b": w(ks[3], (c2,)),
        # neck
        "neck_w": w(ks[4], (1, 1, c2, neck_ch)), "neck_b": w(ks[5], (neck_ch,)),
        # separate detection head
        "cls_w": w(ks[6], (1, 1, neck_ch, num_classes)), "cls_b": w(ks[7], (num_classes,)),
        "reg_w": w(ks[8], (1, 1, neck_ch, 4)), "reg_b": w(ks[9], (4,)),
    }


def prepare_params(raw):
    """Remap PyTorch-style weights into the fused-kernel-ready form."""
    cin = raw["bb1_w"].shape[-2]
    c1 = raw["bb1_w"].shape[-1]
    c2 = raw["bb2_w"].shape[-1]

    # conv1 weight -> block-diagonal (16*9*Cin, 16*C1): one copy per im2col slot
    w1flat = raw["bb1_w"].reshape(9 * cin, c1)
    w1bd = jnp.zeros((16 * 9 * cin, 16 * c1), jnp.float32)
    for k in range(16):
        w1bd = w1bd.at[k * 9 * cin:(k + 1) * 9 * cin, k * c1:(k + 1) * c1].set(w1flat)
    b1t = jnp.tile(raw["bb1_b"].reshape(1, c1), (1, 16))             # (1, 16*C1)

    # conv2 weight in the matching slot layout
    w2s = _s2d_conv_weight(raw["bb2_w"])                             # (16*C1, C2)

    neck_w = raw["neck_w"].reshape(c2, raw["neck_w"].shape[-1])
    cls_w = raw["cls_w"].reshape(raw["cls_w"].shape[-2], raw["cls_w"].shape[-1])
    reg_w = raw["reg_w"].reshape(raw["reg_w"].shape[-2], raw["reg_w"].shape[-1])

    return {
        "bb1_w": w1bd.astype(jnp.bfloat16), "bb1_b": b1t.astype(jnp.float32),
        "bb2_w": w2s.astype(jnp.bfloat16),
        "bb2_b": raw["bb2_b"].reshape(1, -1).astype(jnp.float32),
        "neck_w": neck_w.astype(jnp.bfloat16),
        "neck_b": raw["neck_b"].reshape(1, -1).astype(jnp.float32),
        "head_w": jnp.concatenate([cls_w, reg_w], axis=1).astype(jnp.bfloat16),
        "head_b": jnp.concatenate([raw["cls_b"], raw["reg_b"]]).reshape(1, -1)
                    .astype(jnp.float32),
    }


def build_detector_forward(params, x_nchw, epoch=None):
    # epoch is accepted for API parity with the PyTorch forward; unused here.
    del epoch
    x = jnp.transpose(x_nchw, (0, 2, 3, 1)).astype(jnp.float32)      # NCHW -> NHWC
    B, H, W, _ = x.shape
    # TODO(synk): PyTorch's conv3x3/s2/pad1 also handles H,W not divisible by 4;
    # this fused formulation assumes stride-4 divisibility.
    assert H % 4 == 0 and W % 4 == 0, "spatial dims must be divisible by 4"
    Ho2, Wo2 = H // 4, W // 4
    M2 = Ho2 * Wo2

    c1 = params["bb2_w"].shape[0] // 16
    c2 = params["bb2_w"].shape[-1]
    cn = params["neck_w"].shape[-1]
    Nh = params["head_w"].shape[-1]
    num_classes = Nh - 4

    slots, valid = _conv1_patch_slots(x)                             # (B,M2,16*9*Cin)
    slots = slots.astype(jnp.bfloat16)
    mask = jnp.repeat(valid, c1, axis=1)                             # (M2, 16*C1) f32

    K1 = slots.shape[-1]
    Kc = 16 * c1

    out = pl.pallas_call(
        _detector_kernel,
        out_shape=jax.ShapeDtypeStruct((B, M2, Nh), jnp.float32),
        grid=(B,),
        in_specs=[
            pl.BlockSpec((None, M2, K1), lambda b: (b, 0, 0)),   # per-batch im2col slots
            pl.BlockSpec((M2, Kc), lambda b: (0, 0)),            # pad-validity mask
            pl.BlockSpec((K1, Kc), lambda b: (0, 0)),            # conv1 block-diag weight
            pl.BlockSpec((1, Kc), lambda b: (0, 0)),             # conv1 bias (tiled)
            pl.BlockSpec((Kc, c2), lambda b: (0, 0)),            # conv2 weight
            pl.BlockSpec((1, c2), lambda b: (0, 0)),             # conv2 bias
            pl.BlockSpec((c2, cn), lambda b: (0, 0)),            # neck weight
            pl.BlockSpec((1, cn), lambda b: (0, 0)),             # neck bias
            pl.BlockSpec((cn, Nh), lambda b: (0, 0)),            # fused cls|reg weight
            pl.BlockSpec((1, Nh), lambda b: (0, 0)),             # fused cls|reg bias
        ],
        out_specs=pl.BlockSpec((None, M2, Nh), lambda b: (b, 0, 0)),
        compiler_params=pltpu.CompilerParams(
            dimension_semantics=("parallel",)),                  # 2 steps -> both v7x TCs
    )(slots, mask, params["bb1_w"], params["bb1_b"],
      params["bb2_w"], params["bb2_b"],
      params["neck_w"], params["neck_b"],
      params["head_w"], params["head_b"])

    out = out.reshape(B, Ho2, Wo2, Nh)
    # split fused head output; return NCHW to mirror the PyTorch convention
    cls = jnp.transpose(out[..., :num_classes], (0, 3, 1, 2))
    reg = jnp.transpose(out[..., num_classes:], (0, 3, 1, 2))
    return cls, reg


# TODO(synk): BuildDetector.info()/model_info (param counting / FLOP report) is
# introspection-only and has no Pallas equivalent; omitted.


# ---------------------------------------------------------------------------
# Pure-JAX reference (for correctness check in main)
# ---------------------------------------------------------------------------
def _reference_forward(raw, x_nchw):
    x = jnp.transpose(x_nchw, (0, 2, 3, 1))

    def conv(x, w, b, stride, pad):
        y = jax.lax.conv_general_dilated(
            x, w, (stride, stride), ((pad, pad), (pad, pad)),
            dimension_numbers=("NHWC", "HWIO", "NHWC"))
        return y + b

    x = jax.nn.relu(conv(x, raw["bb1_w"], raw["bb1_b"], 2, 1))
    x = jax.nn.relu(conv(x, raw["bb2_w"], raw["bb2_b"], 2, 1))
    x = jax.nn.relu(conv(x, raw["neck_w"], raw["neck_b"], 1, 0))
    cls = conv(x, raw["cls_w"], raw["cls_b"], 1, 0)
    reg = conv(x, raw["reg_w"], raw["reg_b"], 1, 0)
    return jnp.transpose(cls, (0, 3, 1, 2)), jnp.transpose(reg, (0, 3, 1, 2))


if __name__ == "__main__":
    key = jax.random.PRNGKey(0)
    k_param, k_input = jax.random.split(key)

    raw = init_detector_params(k_param, in_ch=4, num_classes=8)
    params = prepare_params(raw)
    x = jax.random.normal(k_input, (2, 4, 16, 16), dtype=jnp.float32)   # NCHW

    fwd = jax.jit(build_detector_forward)
    cls_out, reg_out = fwd(params, x)
    jax.block_until_ready((cls_out, reg_out))

    assert cls_out.shape == (2, 8, 4, 4), cls_out.shape
    assert reg_out.shape == (2, 4, 4, 4), reg_out.shape

    cls_ref, reg_ref = _reference_forward(raw, x)
    assert jnp.allclose(cls_out, cls_ref, atol=2e-2, rtol=2e-2), \
        float(jnp.max(jnp.abs(cls_out - cls_ref)))
    assert jnp.allclose(reg_out, reg_ref, atol=2e-2, rtol=2e-2), \
        float(jnp.max(jnp.abs(reg_out - reg_ref)))

    print("KERNEL_OK")
</pallas_src>

<mosaic_0001>
module attributes {stable_mosaic.version = 11 : i64} {
  func.func @_detector_kernel(%arg0: i32, %arg1: memref<1x16x576xbf16, #tpu.memory_space<vmem>>, %arg2: memref<16x128xf32, #tpu.memory_space<vmem>>, %arg3: memref<576x128xbf16, #tpu.memory_space<vmem>>, %arg4: memref<1x128xf32, #tpu.memory_space<vmem>>, %arg5: memref<128x16xbf16, #tpu.memory_space<vmem>>, %arg6: memref<1x16xf32, #tpu.memory_space<vmem>>, %arg7: memref<16x16xbf16, #tpu.memory_space<vmem>>, %arg8: memref<1x16xf32, #tpu.memory_space<vmem>>, %arg9: memref<16x12xbf16, #tpu.memory_space<vmem>>, %arg10: memref<1x12xf32, #tpu.memory_space<vmem>>, %arg11: memref<1x16x12xf32, #tpu.memory_space<vmem>>) attributes {dimension_semantics = [#tpu.dimension_semantics<parallel>], iteration_bounds = array<i64: 2>, scalar_prefetch = 0 : i64, scratch_operands = 0 : i64, tpu.core_type = #tpu.core_type<tc>, window_params = [{transform_indices = @transform_0, window_bounds = array<i64: 1, 16, 576>}, {pipeline_mode = #tpu.pipeline_mode<synchronous>, transform_indices = @transform_1, window_bounds = array<i64: 16, 128>}, {pipeline_mode = #tpu.pipeline_mode<synchronous>, transform_indices = @transform_2, window_bounds = array<i64: 576, 128>}, {pipeline_mode = #tpu.pipeline_mode<synchronous>, transform_indices = @transform_3, window_bounds = array<i64: 1, 128>}, {pipeline_mode = #tpu.pipeline_mode<synchronous>, transform_indices = @transform_4, window_bounds = array<i64: 128, 16>}, {pipeline_mode = #tpu.pipeline_mode<synchronous>, transform_indices = @transform_5, window_bounds = array<i64: 1, 16>}, {pipeline_mode = #tpu.pipeline_mode<synchronous>, transform_indices = @transform_6, window_bounds = array<i64: 16, 16>}, {pipeline_mode = #tpu.pipeline_mode<synchronous>, transform_indices = @transform_7, window_bounds = array<i64: 1, 16>}, {pipeline_mode = #tpu.pipeline_mode<synchronous>, transform_indices = @transform_8, window_bounds = array<i64: 16, 12>}, {pipeline_mode = #tpu.pipeline_mode<synchronous>, transform_indices = @transform_9, window_bounds = array<i64: 1, 12>}, {transform_indices = @transform_10, window_bounds = array<i64: 1, 16, 12>}]} {
    %c0 = arith.constant 0 : index
    %c0_0 = arith.constant 0 : index
    %c0_1 = arith.constant 0 : index
    %0 = vector.load %arg1[%c0, %c0_0, %c0_1] : memref<1x16x576xbf16, #tpu.memory_space<vmem>>, vector<1x16x576xbf16>
    %1 = vector.shape_cast %0 : vector<1x16x576xbf16> to vector<16x576xbf16>
    %c0_2 = arith.constant 0 : index
    %c0_3 = arith.constant 0 : index
    %2 = vector.load %arg3[%c0_2, %c0_3] : memref<576x128xbf16, #tpu.memory_space<vmem>>, vector<576x128xbf16>
    %cst = arith.constant dense<0.000000e+00> : vector<16x128xf32>
    %3 = tpu.matmul %1, %2, %cst {dimension_numbers = #tpu.dot_dimension_numbers<[1], [0], [0], [1], [0, 0, 1, 1], [], []>} : vector<16x576xbf16>, vector<576x128xbf16>, vector<16x128xf32> -> vector<16x128xf32>
    %c0_4 = arith.constant 0 : index
    %c0_5 = arith.constant 0 : index
    %4 = vector.load %arg4[%c0_4, %c0_5] : memref<1x128xf32, #tpu.memory_space<vmem>>, vector<1x128xf32>
    %5 = vector.broadcast %4 : vector<1x128xf32> to vector<16x128xf32>
    %6 = arith.addf %3, %5 : vector<16x128xf32>
    %cst_6 = arith.constant 0.000000e+00 : f32
    %7 = vector.broadcast %cst_6 : f32 to vector<16x128xf32>
    %8 = arith.maximumf %6, %7 : vector<16x128xf32>
    %c0_7 = arith.constant 0 : index
    %c0_8 = arith.constant 0 : index
    %9 = vector.load %arg2[%c0_7, %c0_8] : memref<16x128xf32, #tpu.memory_space<vmem>>, vector<16x128xf32>
    %10 = arith.mulf %8, %9 : vector<16x128xf32>
    %11 = arith.truncf %10 : vector<16x128xf32> to vector<16x128xbf16>
    %c0_9 = arith.constant 0 : index
    %c0_10 = arith.constant 0 : index
    %12 = vector.load %arg5[%c0_9, %c0_10] : memref<128x16xbf16, #tpu.memory_space<vmem>>, vector<128x16xbf16>
    %cst_11 = arith.constant dense<0.000000e+00> : vector<16x16xf32>
    %13 = tpu.matmul %11, %12, %cst_11 {dimension_numbers = #tpu.dot_dimension_numbers<[1], [0], [0], [1], [0, 0, 1, 1], [], []>} : vector<16x128xbf16>, vector<128x16xbf16>, vector<16x16xf32> -> vector<16x16xf32>
    %c0_12 = arith.constant 0 : index
    %c0_13 = arith.constant 0 : index
    %14 = vector.load %arg6[%c0_12, %c0_13] : memref<1x16xf32, #tpu.memory_space<vmem>>, vector<1x16xf32>
    %15 = vector.broadcast %14 : vector<1x16xf32> to vector<16x16xf32>
    %16 = arith.addf %13, %15 : vector<16x16xf32>
    %cst_14 = arith.constant 0.000000e+00 : f32
    %17 = vector.broadcast %cst_14 : f32 to vector<16x16xf32>
    %18 = arith.maximumf %16, %17 : vector<16x16xf32>
    %19 = arith.truncf %18 : vector<16x16xf32> to vector<16x16xbf16>
    %c0_15 = arith.constant 0 : index
    %c0_16 = arith.constant 0 : index
    %20 = vector.load %arg7[%c0_15, %c0_16] : memref<16x16xbf16, #tpu.memory_space<vmem>>, vector<16x16xbf16>
    %cst_17 = arith.constant dense<0.000000e+00> : vector<16x16xf32>
    %21 = tpu.matmul %19, %20, %cst_17 {dimension_numbers = #tpu.dot_dimension_numbers<[1], [0], [0], [1], [0, 0, 1, 1], [], []>} : vector<16x16xbf16>, vector<16x16xbf16>, vector<16x16xf32> -> vector<16x16xf32>
    %c0_18 = arith.constant 0 : index
    %c0_19 = arith.constant 0 : index
    %22 = vector.load %arg8[%c0_18, %c0_19] : memref<1x16xf32, #tpu.memory_space<vmem>>, vector<1x16xf32>
    %23 = vector.broadcast %22 : vector<1x16xf32> to vector<16x16xf32>
    %24 = arith.addf %21, %23 : vector<16x16xf32>
    %cst_20 = arith.constant 0.000000e+00 : f32
    %25 = vector.broadcast %cst_20 : f32 to vector<16x16xf32>
    %26 = arith.maximumf %24, %25 : vector<16x16xf32>
    %27 = arith.truncf %26 : vector<16x16xf32> to vector<16x16xbf16>
    %c0_21 = arith.constant 0 : index
    %c0_22 = arith.constant 0 : index
    %28 = vector.load %arg9[%c0_21, %c0_22] : memref<16x12xbf16, #tpu.memory_space<vmem>>, vector<16x12xbf16>
    %cst_23 = arith.constant dense<0.000000e+00> : vector<16x12xf32>
    %29 = tpu.matmul %27, %28, %cst_23 {dimension_numbers = #tpu.dot_dimension_numbers<[1], [0], [0], [1], [0, 0, 1, 1], [], []>} : vector<16x16xbf16>, vector<16x12xbf16>, vector<16x12xf32> -> vector<16x12xf32>
    %c0_24 = arith.constant 0 : index
    %c0_25 = arith.constant 0 : index
    %30 = vector.load %arg10[%c0_24, %c0_25] : memref<1x12xf32, #tpu.memory_space<vmem>>, vector<1x12xf32>
    %31 = vector.broadcast %30 : vector<1x12xf32> to vector<16x12xf32>
    %32 = arith.addf %29, %31 : vector<16x12xf32>
    %c0_26 = arith.constant 0 : index
    %c0_27 = arith.constant 0 : index
    %c0_28 = arith.constant 0 : index
    %33 = vector.load %arg11[%c0_26, %c0_27, %c0_28] : memref<1x16x12xf32, #tpu.memory_space<vmem>>, vector<1x16x12xf32>
    %34 = vector.shape_cast %33 : vector<1x16x12xf32> to vector<16x12xf32>
    %35 = vector.shape_cast %32 : vector<16x12xf32> to vector<1x16x12xf32>
    tpu.vector_store %arg11[%c0_26, %c0_27, %c0_28], %35 {strides = array<i32>} : memref<1x16x12xf32, #tpu.memory_space<vmem>>, vector<1x16x12xf32>,
    return
  }
  func.func @transform_0(%arg0: i32) -> (i32, i32, i32) {
    %c0_i32 = arith.constant 0 : i32
    %c0_i32_0 = arith.constant 0 : i32
    %c0_i32_1 = arith.constant 0 : i32
    return %arg0, %c0_i32, %c0_i32_0 : i32, i32, i32
  }
  func.func @transform_1(%arg0: i32) -> (i32, i32) {
    %c0_i32 = arith.constant 0 : i32
    %c0_i32_0 = arith.constant 0 : i32
    %c0_i32_1 = arith.constant 0 : i32
    return %c0_i32, %c0_i32_0 : i32, i32
  }
  func.func @transform_2(%arg0: i32) -> (i32, i32) {
    %c0_i32 = arith.constant 0 : i32
    %c0_i32_0 = arith.constant 0 : i32
    %c0_i32_1 = arith.constant 0 : i32
    return %c0_i32, %c0_i32_0 : i32, i32
  }
  func.func @transform_3(%arg0: i32) -> (i32, i32) {
    %c0_i32 = arith.constant 0 : i32
    %c0_i32_0 = arith.constant 0 : i32
    %c0_i32_1 = arith.constant 0 : i32
    return %c0_i32, %c0_i32_0 : i32, i32
  }
  func.func @transform_4(%arg0: i32) -> (i32, i32) {
    %c0_i32 = arith.constant 0 : i32
    %c0_i32_0 = arith.constant 0 : i32
    %c0_i32_1 = arith.constant 0 : i32
    return %c0_i32, %c0_i32_0 : i32, i32
  }
  func.func @transform_5(%arg0: i32) -> (i32, i32) {
    %c0_i32 = arith.constant 0 : i32
    %c0_i32_0 = arith.constant 0 : i32
    %c0_i32_1 = arith.constant 0 : i32
    return %c0_i32, %c0_i32_0 : i32, i32
  }
  func.func @transform_6(%arg0: i32) -> (i32, i32) {
    %c0_i32 = arith.constant 0 : i32
    %c0_i32_0 = arith.constant 0 : i32
    %c0_i32_1 = arith.constant 0 : i32
    return %c0_i32, %c0_i32_0 : i32, i32
  }
  func.func @transform_7(%arg0: i32) -> (i32, i32) {
    %c0_i32 = arith.constant 0 : i32
    %c0_i32_0 = arith.constant 0 : i32
    %c0_i32_1 = arith.constant 0 : i32
    return %c0_i32, %c0_i32_0 : i32, i32
  }
  func.func @transform_8(%arg0: i32) -> (i32, i32) {
    %c0_i32 = arith.constant 0 : i32
    %c0_i32_0 = arith.constant 0 : i32
    %c0_i32_1 = arith.constant 0 : i32
    return %c0_i32, %c0_i32_0 : i32, i32
  }
  func.func @transform_9(%arg0: i32) -> (i32, i32) {
    %c0_i32 = arith.constant 0 : i32
    %c0_i32_0 = arith.constant 0 : i32
    %c0_i32_1 = arith.constant 0 : i32
    return %c0_i32, %c0_i32_0 : i32, i32
  }
  func.func @transform_10(%arg0: i32) -> (i32, i32, i32) {
    %c0_i32 = arith.constant 0 : i32
    %c0_i32_0 = arith.constant 0 : i32
    %c0_i32_1 = arith.constant 0 : i32
    return %arg0, %c0_i32, %c0_i32_0 : i32, i32, i32
  }
}

</mosaic_0001>

<llo_original>
// kernel: build_detector_forward.1
$region0: #{build_detector_forward.1}
  #allocation0 [shape = 'u32[]', space=smem, size = 0x4, offset = 0x4, fixed_abs, tag = 'smem constant byte address 0x4 - core index']
  #allocation1 [shape = 'u32[144,128]{1,0:T(1,128)}', space=vmem, size = 0x12000, scoped, tag = 'internal scratch']
  %s0 = inlined_call_operand.vmem [shape: bf16[2,16,576], index: 0, kind: input, shape index: {}]
  %s1 = inlined_call_operand.vmem [shape: f32[16,128], index: 1, kind: input, shape index: {}]
  %s2 = inlined_call_operand.vmem [shape: bf16[576,128], index: 2, kind: input, shape index: {}]
  %s3 = inlined_call_operand.vmem [shape: f32[1,128], index: 3, kind: input, shape index: {}]
  %s4 = inlined_call_operand.vmem [shape: bf16[128,16], index: 4, kind: input, shape index: {}]
  %s5 = inlined_call_operand.vmem [shape: f32[1,16], index: 5, kind: input, shape index: {}]
  %s6 = inlined_call_operand.vmem [shape: bf16[16,16], index: 6, kind: input, shape index: {}]
  %s7 = inlined_call_operand.vmem [shape: f32[1,16], index: 7, kind: input, shape index: {}]
  %s8 = inlined_call_operand.vmem [shape: bf16[16,12], index: 8, kind: input, shape index: {}]
  %s9 = inlined_call_operand.vmem [shape: f32[1,12], index: 9, kind: input, shape index: {}]
  %s10 = inlined_call_operand.vmem [shape: f32[2,16,12], index: 10, kind: output, shape index: {}]
  %s11 = sld [smem:[#allocation0]]
  $region73: #{build_detector_forward.1} parent=0
    _
  %s13 = ssub.s32 1, %s11
  %s14 = scalar_select 0, %s13, %s11
  loop: start=0, step=1, limit=4
  $region2: #{build_detector_forward.1} parent=0 // loop_pre_header
    _
  $region3: #{build_detector_forward.1} parent=0 // loop_header
    %s16 = sphi 0, %s20
    %p17 = scmp.ge.s32.totalorder %s16, 4
    %s26 = sphi 0, %s28
    %s29 = sphi 0, %s26
    %s30 = sphi 0, %s29
    %s46 = sphi 0, %s30
    %s50 = sphi 0, %s50
    %s52 = sphi 0, %s50
    %s53 = sphi 0, %s52
    %s67 = sphi 0, %s53
    %s71 = sphi 0, %s71
    %s73 = sphi 0, %s71
    %s74 = sphi 0, %s73
    %s88 = sphi 0, %s74
    %s92 = sphi 0, %s92
    %s94 = sphi 0, %s92
    %s95 = sphi 0, %s94
    %s109 = sphi 0, %s95
    %s113 = sphi 0, %s113
    %s115 = sphi 0, %s113
    %s116 = sphi 0, %s115
    %s130 = sphi 0, %s116
    %s134 = sphi 0, %s134
    %s136 = sphi 0, %s134
    %s137 = sphi 0, %s136
    %s151 = sphi 0, %s137
    %s155 = sphi 0, %s155
    %s157 = sphi 0, %s155
    %s158 = sphi 0, %s157
    %s172 = sphi 0, %s158
    %s176 = sphi 0, %s176
    %s178 = sphi 0, %s176
    %s179 = sphi 0, %s178
    %s193 = sphi 0, %s179
    %s197 = sphi 0, %s197
    %s199 = sphi 0, %s197
    %s200 = sphi 0, %s199
    %s214 = sphi 0, %s200
    %s218 = sphi 0, %s218
    %s220 = sphi 0, %s218
    %s221 = sphi 0, %s220
    %s235 = sphi 0, %s221
    %s241 = sphi 0, %s243
    %s244 = sphi 0, %s241
    %s245 = sphi 0, %s244
    %s261 = sphi 0, %s245
  $region4: #{build_detector_forward.1} parent=0 // loop_header_branch
    %19 = sbr.rel (%p17) target = $region8
  $region5: #{build_detector_forward.1} parent=0 // loop_body
    %s21 = ssub.s32 %s16, 1
    %s22 = ssub.s32 %s16, 2
    %s23 = sadd.s32 %s16, 1
    %s24 = ssub.s32 %s16, %s23
    %p25 = scmp.eq.s32.totalorder %s24, 0
    %s27 = sadd.s32 %s26, 1
    %s28 = scalar_select %p25, %s26, %s27
    %p31 = pneg %p25
    %p32 = scmp.eq.s32.totalorder %s16, 1
    %p33 = por %p31, %p32
    %p34 = scmp.ne.s32.totalorder %s26, %s29
    %p35 = scmp.eq.s32.totalorder %s16, 0
    %p36 = por %p34, %p35
    %p37 = scmp.ne.s32.totalorder %s26, %s29
    %p38 = scmp.eq.s32.totalorder %s21, 1
    %p39 = por %p37, %p38
    %p40 = scmp.ne.s32.totalorder %s29, %s30
    %p41 = scmp.eq.s32.totalorder %s21, 0
    %p42 = por %p40, %p41
    %p43 = scmp.ne.s32.totalorder %s29, %s30
    %p44 = scmp.eq.s32.totalorder %s22, 1
    %p45 = por %p43, %p44
    %p47 = scmp.ne.s32.totalorder %s30, %s46
    %p48 = scmp.eq.s32.totalorder %s22, 0
    %p49 = por %p47, %p48
    %s51 = sadd.s32 %s50, 1
    %p54 = scmp.eq.s32.totalorder %s16, 1
    %p55 = scmp.ne.s32.totalorder %s50, %s52
    %p56 = scmp.eq.s32.totalorder %s16, 0
    %p57 = por %p55, %p56
    %p58 = scmp.ne.s32.totalorder %s50, %s52
    %p59 = scmp.eq.s32.totalorder %s21, 1
    %p60 = por %p58, %p59
    %p61 = scmp.ne.s32.totalorder %s52, %s53
    %p62 = scmp.eq.s32.totalorder %s21, 0
    %p63 = por %p61, %p62
    %p64 = scmp.ne.s32.totalorder %s52, %s53
    %p65 = scmp.eq.s32.totalorder %s22, 1
    %p66 = por %p64, %p65
    %p68 = scmp.ne.s32.totalorder %s53, %s67
    %p69 = scmp.eq.s32.totalorder %s22, 0
    %p70 = por %p68, %p69
    %s72 = sadd.s32 %s71, 1
    %p75 = scmp.eq.s32.totalorder %s16, 1
    %p76 = scmp.ne.s32.totalorder %s71, %s73
    %p77 = scmp.eq.s32.totalorder %s16, 0
    %p78 = por %p76, %p77
    %p79 = scmp.ne.s32.totalorder %s71, %s73
    %p80 = scmp.eq.s32.totalorder %s21, 1
    %p81 = por %p79, %p80
    %p82 = scmp.ne.s32.totalorder %s73, %s74
    %p83 = scmp.eq.s32.totalorder %s21, 0
    %p84 = por %p82, %p83
    %p85 = scmp.ne.s32.totalorder %s73, %s74
    %p86 = scmp.eq.s32.totalorder %s22, 1
    %p87 = por %p85, %p86
    %p89 = scmp.ne.s32.totalorder %s74, %s88
    %p90 = scmp.eq.s32.totalorder %s22, 0
    %p91 = por %p89, %p90
    %s93 = sadd.s32 %s92, 1
    %p96 = scmp.eq.s32.totalorder %s16, 1
    %p97 = scmp.ne.s32.totalorder %s92, %s94
    %p98 = scmp.eq.s32.totalorder %s16, 0
    %p99 = por %p97, %p98
    %p100 = scmp.ne.s32.totalorder %s92, %s94
    %p101 = scmp.eq.s32.totalorder %s21, 1
    %p102 = por %p100, %p101
    %p103 = scmp.ne.s32.totalorder %s94, %s95
    %p104 = scmp.eq.s32.totalorder %s21, 0
    %p105 = por %p103, %p104
    %p106 = scmp.ne.s32.totalorder %s94, %s95
    %p107 = scmp.eq.s32.totalorder %s22, 1
    %p108 = por %p106, %p107
    %p110 = scmp.ne.s32.totalorder %s95, %s109
    %p111 = scmp.eq.s32.totalorder %s22, 0
    %p112 = por %p110, %p111
    %s114 = sadd.s32 %s113, 1
    %p117 = scmp.eq.s32.totalorder %s16, 1
    %p118 = scmp.ne.s32.totalorder %s113, %s115
    %p119 = scmp.eq.s32.totalorder %s16, 0
    %p120 = por %p118, %p119
    %p121 = scmp.ne.s32.totalorder %s113, %s115
    %p122 = scmp.eq.s32.totalorder %s21, 1
    %p123 = por %p121, %p122
    %p124 = scmp.ne.s32.totalorder %s115, %s116
    %p125 = scmp.eq.s32.totalorder %s21, 0
    %p126 = por %p124, %p125
    %p127 = scmp.ne.s32.totalorder %s115, %s116
    %p128 = scmp.eq.s32.totalorder %s22, 1
    %p129 = por %p127, %p128
    %p131 = scmp.ne.s32.totalorder %s116, %s130
    %p132 = scmp.eq.s32.totalorder %s22, 0
    %p133 = por %p131, %p132
    %s135 = sadd.s32 %s134, 1
    %p138 = scmp.eq.s32.totalorder %s16, 1
    %p139 = scmp.ne.s32.totalorder %s134, %s136
    %p140 = scmp.eq.s32.totalorder %s16, 0
    %p141 = por %p139, %p140
    %p142 = scmp.ne.s32.totalorder %s134, %s136
    %p143 = scmp.eq.s32.totalorder %s21, 1
    %p144 = por %p142, %p143
    %p145 = scmp.ne.s32.totalorder %s136, %s137
    %p146 = scmp.eq.s32.totalorder %s21, 0
    %p147 = por %p145, %p146
    %p148 = scmp.ne.s32.totalorder %s136, %s137
    %p149 = scmp.eq.s32.totalorder %s22, 1
    %p150 = por %p148, %p149
    %p152 = scmp.ne.s32.totalorder %s137, %s151
    %p153 = scmp.eq.s32.totalorder %s22, 0
    %p154 = por %p152, %p153
    %s156 = sadd.s32 %s155, 1
    %p159 = scmp.eq.s32.totalorder %s16, 1
    %p160 = scmp.ne.s32.totalorder %s155, %s157
    %p161 = scmp.eq.s32.totalorder %s16, 0
    %p162 = por %p160, %p161
    %p163 = scmp.ne.s32.totalorder %s155, %s157
    %p164 = scmp.eq.s32.totalorder %s21, 1
    %p165 = por %p163, %p164
    %p166 = scmp.ne.s32.totalorder %s157, %s158
    %p167 = scmp.eq.s32.totalorder %s21, 0
    %p168 = por %p166, %p167
    %p169 = scmp.ne.s32.totalorder %s157, %s158
    %p170 = scmp.eq.s32.totalorder %s22, 1
    %p171 = por %p169, %p170
    %p173 = scmp.ne.s32.totalorder %s158, %s172
    %p174 = scmp.eq.s32.totalorder %s22, 0
    %p175 = por %p173, %p174
    %s177 = sadd.s32 %s176, 1
    %p180 = scmp.eq.s32.totalorder %s16, 1
    %p181 = scmp.ne.s32.totalorder %s176, %s178
    %p182 = scmp.eq.s32.totalorder %s16, 0
    %p183 = por %p181, %p182
    %p184 = scmp.ne.s32.totalorder %s176, %s178
    %p185 = scmp.eq.s32.totalorder %s21, 1
    %p186 = por %p184, %p185
    %p187 = scmp.ne.s32.totalorder %s178, %s179
    %p188 = scmp.eq.s32.totalorder %s21, 0
    %p189 = por %p187, %p188
    %p190 = scmp.ne.s32.totalorder %s178, %s179
    %p191 = scmp.eq.s32.totalorder %s22, 1
    %p192 = por %p190, %p191
    %p194 = scmp.ne.s32.totalorder %s179, %s193
    %p195 = scmp.eq.s32.totalorder %s22, 0
    %p196 = por %p194, %p195
    %s198 = sadd.s32 %s197, 1
    %p201 = scmp.eq.s32.totalorder %s16, 1
    %p202 = scmp.ne.s32.totalorder %s197, %s199
    %p203 = scmp.eq.s32.totalorder %s16, 0
    %p204 = por %p202, %p203
    %p205 = scmp.ne.s32.totalorder %s197, %s199
    %p206 = scmp.eq.s32.totalorder %s21, 1
    %p207 = por %p205, %p206
    %p208 = scmp.ne.s32.totalorder %s199, %s200
    %p209 = scmp.eq.s32.totalorder %s21, 0
    %p210 = por %p208, %p209
    %p211 = scmp.ne.s32.totalorder %s199, %s200
    %p212 = scmp.eq.s32.totalorder %s22, 1
    %p213 = por %p211, %p212
    %p215 = scmp.ne.s32.totalorder %s200, %s214
    %p216 = scmp.eq.s32.totalorder %s22, 0
    %p217 = por %p215, %p216
    %s219 = sadd.s32 %s218, 1
    %p222 = scmp.eq.s32.totalorder %s16, 1
    %p223 = scmp.ne.s32.totalorder %s218, %s220
    %p224 = scmp.eq.s32.totalorder %s16, 0
    %p225 = por %p223, %p224
    %p226 = scmp.ne.s32.totalorder %s218, %s220
    %p227 = scmp.eq.s32.totalorder %s21, 1
    %p228 = por %p226, %p227
    %p229 = scmp.ne.s32.totalorder %s220, %s221
    %p230 = scmp.eq.s32.totalorder %s21, 0
    %p231 = por %p229, %p230
    %p232 = scmp.ne.s32.totalorder %s220, %s221
    %p233 = scmp.eq.s32.totalorder %s22, 1
    %p234 = por %p232, %p233
    %p236 = scmp.ne.s32.totalorder %s221, %s235
    %p237 = scmp.eq.s32.totalorder %s22, 0
    %p238 = por %p236, %p237
    %s239 = ssub.s32 %s16, %s23
    %p240 = scmp.eq.s32.totalorder %s239, 0
    %s242 = sadd.s32 %s241, 1
    %s243 = scalar_select %p240, %s241, %s242
    %p246 = pneg %p240
    %p247 = scmp.eq.s32.totalorder %s16, 1
    %p248 = por %p246, %p247
    %p249 = scmp.ne.s32.totalorder %s241, %s244
    %p250 = scmp.eq.s32.totalorder %s16, 0
    %p251 = por %p249, %p250
    %p252 = scmp.ne.s32.totalorder %s241, %s244
    %p253 = scmp.eq.s32.totalorder %s21, 1
    %p254 = por %p252, %p253
    %p255 = scmp.ne.s32.totalorder %s244, %s245
    %p256 = scmp.eq.s32.totalorder %s21, 0
    %p257 = por %p255, %p256
    %p258 = scmp.ne.s32.totalorder %s244, %s245
    %p259 = scmp.eq.s32.totalorder %s22, 1
    %p260 = por %p258, %p259
    %p262 = scmp.ne.s32.totalorder %s245, %s261
    %p263 = scmp.eq.s32.totalorder %s22, 0
    %p264 = por %p262, %p263
    %p265 = scmp.le.s32.totalorder 1, %s16
    %p266 = scmp.lt.s32.totalorder %s16, 3
    %p267 = pnand %p265, %p266
    %p268 = pneg %p267
    // Predicated region
    $region9: #{build_detector_forward.1} parent=5 // pred_check
      _
    $region10: #{build_detector_forward.1} parent=5 // pred_check_branch
      %270 = sbr.rel (%p267) target = $region12
    $region11: #{build_detector_forward.1} parent=5 // pred_region
      %s271 = ssub.s32 %s16, 1
      // Predicated region
      $region13: #{build_detector_forward.1} parent=11 // pred_check
        %p272 = pneg %p63
      $region14: #{build_detector_forward.1} parent=11 // pred_check_branch
        %274 = sbr.rel (%p272) target = $region16
      $region15: #{build_detector_forward.1} parent=11 // pred_region
        _
      $region16: #{build_detector_forward.1} parent=11 // pred_fallthru
        _
      // Predicated region
      $region17: #{build_detector_forward.1} parent=11 // pred_check
        %p275 = pneg %p84
      $region18: #{build_detector_forward.1} parent=11 // pred_check_branch
        %277 = sbr.rel (%p275) target = $region20
      $region19: #{build_detector_forward.1} parent=11 // pred_region
        _
      $region20: #{build_detector_forward.1} parent=11 // pred_fallthru
        _
      // Predicated region
      $region21: #{build_detector_forward.1} parent=11 // pred_check
        %p278 = pneg %p105
      $region22: #{build_detector_forward.1} parent=11 // pred_check_branch
        %280 = sbr.rel (%p278) target = $region24
      $region23: #{build_detector_forward.1} parent=11 // pred_region
        _
      $region24: #{build_detector_forward.1} parent=11 // pred_fallthru
        _
      // Predicated region
      $region25: #{build_detector_forward.1} parent=11 // pred_check
        %p281 = pneg %p126
      $region26: #{build_detector_forward.1} parent=11 // pred_check_branch
        %283 = sbr.rel (%p281) target = $region28
      $region27: #{build_detector_forward.1} parent=11 // pred_region
        _
      $region28: #{build_detector_forward.1} parent=11 // pred_fallthru
        _
      // Predicated region
      $region29: #{build_detector_forward.1} parent=11 // pred_check
        %p284 = pneg %p147
      $region30: #{build_detector_forward.1} parent=11 // pred_check_branch
        %286 = sbr.rel (%p284) target = $region32
      $region31: #{build_detector_forward.1} parent=11 // pred_region
        _
      $region32: #{build_detector_forward.1} parent=11 // pred_fallthru
        _
      // Predicated region
      $region33: #{build_detector_forward.1} parent=11 // pred_check
        %p287 = pneg %p168
      $region34: #{build_detector_forward.1} parent=11 // pred_check_branch
        %289 = sbr.rel (%p287) target = $region36
      $region35: #{build_detector_forward.1} parent=11 // pred_region
        _
      $region36: #{build_detector_forward.1} parent=11 // pred_fallthru
        _
      // Predicated region
      $region37: #{build_detector_forward.1} parent=11 // pred_check
        %p290 = pneg %p189
      $region38: #{build_detector_forward.1} parent=11 // pred_check_branch
        %292 = sbr.rel (%p290) target = $region40
      $region39: #{build_detector_forward.1} parent=11 // pred_region
        _
      $region40: #{build_detector_forward.1} parent=11 // pred_fallthru
        _
      // Predicated region
      $region41: #{build_detector_forward.1} parent=11 // pred_check
        %p293 = pneg %p210
      $region42: #{build_detector_forward.1} parent=11 // pred_check_branch
        %295 = sbr.rel (%p293) target = $region44
      $region43: #{build_detector_forward.1} parent=11 // pred_region
        _
      $region44: #{build_detector_forward.1} parent=11 // pred_fallthru
        _
      // Predicated region
      $region45: #{build_detector_forward.1} parent=11 // pred_check
        %p296 = pneg %p231
      $region46: #{build_detector_forward.1} parent=11 // pred_check_branch
        %298 = sbr.rel (%p296) target = $region48
      $region47: #{build_detector_forward.1} parent=11 // pred_region
        _
      $region48: #{build_detector_forward.1} parent=11 // pred_fallthru
        _
    $region12: #{build_detector_forward.1} parent=5 // pred_fallthru
      _
    %p299 = scmp.lt.s32.totalorder %s16, 2
    // Predicated region
    $region49: #{build_detector_forward.1} parent=5 // pred_check
      %p300 = pneg %p299
    $region50: #{build_detector_forward.1} parent=5 // pred_check_branch
      %302 = sbr.rel (%p300) target = $region52
    $region51: #{build_detector_forward.1} parent=5 // pred_region
      // Predicated region
      $region53: #{build_detector_forward.1} parent=51 // pred_check
        %p303 = pneg %p36
      $region54: #{build_detector_forward.1} parent=51 // pred_check_branch
        %305 = sbr.rel (%p303) target = $region56
      $region55: #{build_detector_forward.1} parent=51 // pred_region
        %p306 = scmp.lt.s32.totalorder %s16, 1
        %s307 = scalar_select %p306, %s16, 1
        %s308 = smul.addr %s307, 10
        %s309 = smul.addr %s308, 4
        %s310 = scalar_lea.vmem %s0, %s309
      $region56: #{build_detector_forward.1} parent=51 // pred_fallthru
        _
    $region52: #{build_detector_forward.1} parent=5 // pred_fallthru
      _
    %p311 = scmp.le.s32.totalorder 1, %s16
    %p312 = scmp.lt.s32.totalorder %s16, 3
    %p313 = pnand %p311, %p312
    %p314 = pneg %p313
    // Predicated region
    $region57: #{build_detector_forward.1} parent=5 // pred_check
      _
    $region58: #{build_detector_forward.1} parent=5 // pred_check_branch
      %316 = sbr.rel (%p313) target = $region60
    $region59: #{build_detector_forward.1} parent=5 // pred_region
      %s317 = ssub.s32 %s16, 1
      %p318 = scmp.lt.s32.totalorder %s21, 1
      %s319 = scalar_select %p318, %s21, 1
      %s320 = smul.addr %s319, 10
      %s321 = smul.addr %s320, 4
      %s322 = scalar_lea.vmem %s0, %s321
      %p323 = pneg %p42
      %p324 = pneg %p39
      %p325 = pneg %p63
      %p326 = pneg %p60
      %p327 = pneg %p84
      %p328 = pneg %p81
      %p329 = pneg %p105
      %p330 = pneg %p102
      %p331 = pneg %p126
      %p332 = pneg %p123
      %p333 = pneg %p147
      %p334 = pneg %p144
      %p335 = pneg %p168
      %p336 = pneg %p165
      %p337 = pneg %p189
      %p338 = pneg %p186
      %p339 = pneg %p210
      %p340 = pneg %p207
      %p341 = pneg %p231
      %p342 = pneg %p228
      %p343 = pneg %p257
      %p344 = pneg %p254
      %p345 = scmp.lt.s32.totalorder %s21, 1
      %s346 = scalar_select %p345, %s21, 1
      %s347 = smul.addr %s346, 2
      %s348 = smul.addr %s347, 8
      %s349 = scalar_lea.vmem %s10, %s348
      %p350 = scmp.lt.s32.totalorder %s21, 1
      %s351 = scalar_select %p350, %s21, 1
      %s352 = smul.addr %s351, 10
      %s353 = smul.addr %s352, 4
      %s354 = scalar_lea.vmem %s0, %s353
      %p355 = scmp.lt.s32.totalorder %s21, 1
      %s356 = scalar_select %p355, %s21, 1
      %s357 = smul.addr %s356, 2
      %s358 = smul.addr %s357, 8
      %s359 = scalar_lea.vmem %s10, %s358
      %v361 = vld [vmem:[%s354] sm:$0xff]
      %v362 = vld [vmem:[%s354 + $0x8] sm:$0xff]
      %v363 = vld [vmem:[%s354 + $0x10] sm:$0xf]
      %v364 = vld [vmem:[%s354 + $0x14] sm:$0xff]
      %v365 = vld [vmem:[%s354 + $0x1c] sm:$0xff]
      %v366 = vld [vmem:[%s354 + $0x24] sm:$0xf]
      %v367 = vld [vmem:[%s2] sm:$0xf]
      %v368 = vld [vmem:[%s2 + $0x4] sm:$0xf]
      %v369 = vld [vmem:[%s2 + $0x8] sm:$0xf]
      %v370 = vld [vmem:[%s2 + $0xc] sm:$0xf]
      %v371 = vld [vmem:[%s2 + $0x10] sm:$0xf]
      %v372 = vld [vmem:[%s2 + $0x14] sm:$0xf]
      %v373 = vld [vmem:[%s2 + $0x18] sm:$0xf]
      %v374 = vld [vmem:[%s2 + $0x1c] sm:$0xf]
      %v375 = vld [vmem:[%s2 + $0x20] sm:$0xf]
      %v376 = vld [vmem:[%s2 + $0x24] sm:$0xf]
      %v377 = vld [vmem:[%s2 + $0x28] sm:$0xf]
      %v378 = vld [vmem:[%s2 + $0x2c] sm:$0xf]
      %v379 = vld [vmem:[%s2 + $0x30] sm:$0xf]
      %v380 = vld [vmem:[%s2 + $0x34] sm:$0xf]
      %v381 = vld [vmem:[%s2 + $0x38] sm:$0xf]
      %v382 = vld [vmem:[%s2 + $0x3c] sm:$0xf]
      %v383 = vld [vmem:[%s2 + $0x40] sm:$0xf]
      %v384 = vld [vmem:[%s2 + $0x44] sm:$0xf]
      %v385 = vld [vmem:[%s2 + $0x48] sm:$0xf]
      %v386 = vld [vmem:[%s2 + $0x4c] sm:$0xf]
      %v387 = vld [vmem:[%s2 + $0x50] sm:$0xf]
      %v388 = vld [vmem:[%s2 + $0x54] sm:$0xf]
      %v389 = vld [vmem:[%s2 + $0x58] sm:$0xf]
      %v390 = vld [vmem:[%s2 + $0x5c] sm:$0xf]
      %v391 = vld [vmem:[%s2 + $0x60] sm:$0xf]
      %v392 = vld [vmem:[%s2 + $0x64] sm:$0xf]
      %v393 = vld [vmem:[%s2 + $0x68] sm:$0xf]
      %v394 = vld [vmem:[%s2 + $0x6c] sm:$0xf]
      %v395 = vld [vmem:[%s2 + $0x70] sm:$0xf]
      %v396 = vld [vmem:[%s2 + $0x74] sm:$0xf]
      %v397 = vld [vmem:[%s2 + $0x78] sm:$0xf]
      %v398 = vld [vmem:[%s2 + $0x7c] sm:$0xf]
      %v399 = vld [vmem:[%s2 + $0x80] sm:$0xf]
      %v400 = vld [vmem:[%s2 + $0x84] sm:$0xf]
      %v401 = vld [vmem:[%s2 + $0x88] sm:$0xf]
      %v402 = vld [vmem:[%s2 + $0x8c] sm:$0xf]
      %v403 = vld [vmem:[%s2 + $0x90] sm:$0xf]
      %v404 = vld [vmem:[%s2 + $0x94] sm:$0xf]
      %v405 = vld [vmem:[%s2 + $0x98] sm:$0xf]
      %v406 = vld [vmem:[%s2 + $0x9c] sm:$0xf]
      %v407 = vld [vmem:[%s2 + $0xa0] sm:$0xf]
      %v408 = vld [vmem:[%s2 + $0xa4] sm:$0xf]
      %v409 = vld [vmem:[%s2 + $0xa8] sm:$0xf]
      %v410 = vld [vmem:[%s2 + $0xac] sm:$0xf]
      %v411 = vld [vmem:[%s2 + $0xb0] sm:$0xf]
      %v412 = vld [vmem:[%s2 + $0xb4] sm:$0xf]
      %v413 = vld [vmem:[%s2 + $0xb8] sm:$0xf]
      %v414 = vld [vmem:[%s2 + $0xbc] sm:$0xf]
      %v415 = vld [vmem:[%s2 + $0xc0] sm:$0xf]
      %v416 = vld [vmem:[%s2 + $0xc4] sm:$0xf]
      %v417 = vld [vmem:[%s2 + $0xc8] sm:$0xf]
      %v418 = vld [vmem:[%s2 + $0xcc] sm:$0xf]
      %v419 = vld [vmem:[%s2 + $0xd0] sm:$0xf]
      %v420 = vld [vmem:[%s2 + $0xd4] sm:$0xf]
      %v421 = vld [vmem:[%s2 + $0xd8] sm:$0xf]
      %v422 = vld [vmem:[%s2 + $0xdc] sm:$0xf]
      %v423 = vld [vmem:[%s2 + $0xe0] sm:$0xf]
      %v424 = vld [vmem:[%s2 + $0xe4] sm:$0xf]
      %v425 = vld [vmem:[%s2 + $0xe8] sm:$0xf]
      %v426 = vld [vmem:[%s2 + $0xec] sm:$0xf]
      %v427 = vld [vmem:[%s2 + $0xf0] sm:$0xf]
      %v428 = vld [vmem:[%s2 + $0xf4] sm:$0xf]
      %v429 = vld [vmem:[%s2 + $0xf8] sm:$0xf]
      %v430 = vld [vmem:[%s2 + $0xfc] sm:$0xf]
      %v431 = vld [vmem:[%s2 + $0x100] sm:$0xf]
      %v432 = vld [vmem:[%s2 + $0x104] sm:$0xf]
      %v433 = vld [vmem:[%s2 + $0x108] sm:$0xf]
      %v434 = vld [vmem:[%s2 + $0x10c] sm:$0xf]
      %v435 = vld [vmem:[%s2 + $0x110] sm:$0xf]
      %v436 = vld [vmem:[%s2 + $0x114] sm:$0xf]
      %v437 = vld [vmem:[%s2 + $0x118] sm:$0xf]
      %v438 = vld [vmem:[%s2 + $0x11c] sm:$0xf]
      %v439 = vld [vmem:[%s3] sm:$0x1]
      %v441 = vlaneseq
      %v442 = vshrl.u32 %v441, 7
      %v443 = vsub.s32 0, %v442
      %v444 = vrot.slane %v439, %v443
      %v452 = vunpack.c.l.b16 %v361
      %v453 = vunpack.c.h.b16 %v361
      %v454 = vunpack.c.l.b16 %v362
      %v455 = vunpack.c.h.b16 %v362
      %v456 = vunpack.c.l.b16 %v363
      %v457 = vunpack.c.l.b16 %v364
      %v458 = vunpack.c.h.b16 %v364
      %v459 = vunpack.c.l.b16 %v365
      %v460 = vunpack.c.h.b16 %v365
      %v461 = vunpack.c.l.b16 %v366
      %v462 = vpack.c.b16 %v457, %v452
      %v463 = vpack.c.b16 %v458, %v453
      %v464 = vpack.c.b16 %v459, %v454
      %v465 = vpack.c.b16 %v460, %v455
      %v466 = vpack.c.b16 %v461, %v456
      %v543 = vunpack.c.l.b16 %v367
      %v544 = vunpack.c.l.b16 %v368
      %v545 = vunpack.c.l.b16 %v369
      %v546 = vunpack.c.l.b16 %v370
      %v547 = vunpack.c.l.b16 %v371
      %v548 = vunpack.c.l.b16 %v372
      %v549 = vunpack.c.l.b16 %v373
      %v550 = vunpack.c.l.b16 %v374
      %v551 = vunpack.c.l.b16 %v375
      %v552 = vunpack.c.l.b16 %v376
      %v553 = vunpack.c.l.b16 %v377
      %v554 = vunpack.c.l.b16 %v378
      %v555 = vunpack.c.l.b16 %v379
      %v556 = vunpack.c.l.b16 %v380
      %v557 = vunpack.c.l.b16 %v381
      %v558 = vunpack.c.l.b16 %v382
      %v559 = vunpack.c.l.b16 %v383
      %v560 = vunpack.c.l.b16 %v384
      %v561 = vunpack.c.l.b16 %v385
      %v562 = vunpack.c.l.b16 %v386
      %v563 = vunpack.c.l.b16 %v387
      %v564 = vunpack.c.l.b16 %v388
      %v565 = vunpack.c.l.b16 %v389
      %v566 = vunpack.c.l.b16 %v390
      %v567 = vunpack.c.l.b16 %v391
      %v568 = vunpack.c.l.b16 %v392
      %v569 = vunpack.c.l.b16 %v393
      %v570 = vunpack.c.l.b16 %v394
      %v571 = vunpack.c.l.b16 %v395
      %v572 = vunpack.c.l.b16 %v396
      %v573 = vunpack.c.l.b16 %v397
      %v574 = vunpack.c.l.b16 %v398
      %v575 = vunpack.c.l.b16 %v399
      %v576 = vunpack.c.l.b16 %v400
      %v577 = vunpack.c.l.b16 %v401
      %v578 = vunpack.c.l.b16 %v402
      %v579 = vunpack.c.l.b16 %v403
      %v580 = vunpack.c.l.b16 %v404
      %v581 = vunpack.c.l.b16 %v405
      %v582 = vunpack.c.l.b16 %v406
      %v583 = vunpack.c.l.b16 %v407
      %v584 = vunpack.c.l.b16 %v408
      %v585 = vunpack.c.l.b16 %v409
      %v586 = vunpack.c.l.b16 %v410
      %v587 = vunpack.c.l.b16 %v411
      %v588 = vunpack.c.l.b16 %v412
      %v589 = vunpack.c.l.b16 %v413
      %v590 = vunpack.c.l.b16 %v414
      %v591 = vunpack.c.l.b16 %v415
      %v592 = vunpack.c.l.b16 %v416
      %v593 = vunpack.c.l.b16 %v417
      %v594 = vunpack.c.l.b16 %v418
      %v595 = vunpack.c.l.b16 %v419
      %v596 = vunpack.c.l.b16 %v420
      %v597 = vunpack.c.l.b16 %v421
      %v598 = vunpack.c.l.b16 %v422
      %v599 = vunpack.c.l.b16 %v423
      %v600 = vunpack.c.l.b16 %v424
      %v601 = vunpack.c.l.b16 %v425
      %v602 = vunpack.c.l.b16 %v426
      %v603 = vunpack.c.l.b16 %v427
      %v604 = vunpack.c.l.b16 %v428
      %v605 = vunpack.c.l.b16 %v429
      %v606 = vunpack.c.l.b16 %v430
      %v607 = vunpack.c.l.b16 %v431
      %v608 = vunpack.c.l.b16 %v432
      %v609 = vunpack.c.l.b16 %v433
      %v610 = vunpack.c.l.b16 %v434
      %v611 = vunpack.c.l.b16 %v435
      %v612 = vunpack.c.l.b16 %v436
      %v613 = vunpack.c.l.b16 %v437
      %v614 = vunpack.c.l.b16 %v438
      %v615 = vpack.c.b16 %v544, %v543
      %v616 = vpack.c.b16 %v546, %v545
      %v617 = vpack.c.b16 %v548, %v547
      %v618 = vpack.c.b16 %v550, %v549
      %v619 = vpack.c.b16 %v552, %v551
      %v620 = vpack.c.b16 %v554, %v553
      %v621 = vpack.c.b16 %v556, %v555
      %v622 = vpack.c.b16 %v558, %v557
      %v623 = vpack.c.b16 %v560, %v559
      %v624 = vpack.c.b16 %v562, %v561
      %v625 = vpack.c.b16 %v564, %v563
      %v626 = vpack.c.b16 %v566, %v565
      %v627 = vpack.c.b16 %v568, %v567
      %v628 = vpack.c.b16 %v570, %v569
      %v629 = vpack.c.b16 %v572, %v571
      %v630 = vpack.c.b16 %v574, %v573
      %v631 = vpack.c.b16 %v576, %v575
      %v632 = vpack.c.b16 %v578, %v577
      %v633 = vpack.c.b16 %v580, %v579
      %v634 = vpack.c.b16 %v582, %v581
      %v635 = vpack.c.b16 %v584, %v583
      %v636 = vpack.c.b16 %v586, %v585
      %v637 = vpack.c.b16 %v588, %v587
      %v638 = vpack.c.b16 %v590, %v589
      %v639 = vpack.c.b16 %v592, %v591
      %v640 = vpack.c.b16 %v594, %v593
      %v641 = vpack.c.b16 %v596, %v595
      %v642 = vpack.c.b16 %v598, %v597
      %v643 = vpack.c.b16 %v600, %v599
      %v644 = vpack.c.b16 %v602, %v601
      %v645 = vpack.c.b16 %v604, %v603
      %v646 = vpack.c.b16 %v606, %v605
      %v647 = vpack.c.b16 %v608, %v607
      %v648 = vpack.c.b16 %v610, %v609
      %v649 = vpack.c.b16 %v612, %v611
      %v650 = vpack.c.b16 %v614, %v613
      %vm687 = vcmask 523264
      %v689 = vsel %vm687, %v466, 0
      %691 = vmatprep.subr.bf16.mxu0 0
      %692 = vmatpush1.bf16.msra.mxu0 %v615
      %693 = vmatprep.subr.bf16.mxu0 0
      %694 = vmatpush1.bf16.msra.mxu0 %v616
      %695 = vmatprep.subr.bf16.mxu0 0
      %696 = vmatpush1.bf16.msra.mxu0 %v617
      %697 = vmatprep.subr.bf16.mxu0 0
      %698 = vmatpush1.bf16.msra.mxu0 %v618
      %699 = vmatprep.subr.bf16.mxu0 0
      %700 = vmatpush1.bf16.msra.mxu0 %v619
      %701 = vmatprep.subr.bf16.mxu0 0
      %702 = vmatpush1.bf16.msra.mxu0 %v620
      %703 = vmatprep.subr.bf16.mxu0 0
      %704 = vmatpush1.bf16.msra.mxu0 %v621
      %705 = vmatprep.subr.bf16.mxu0 0
      %706 = vmatpush1.bf16.msra.mxu0 %v622
      %707 = vmatprep.subr.bf16.mxu0 0
      %708 = vmatpush1.bf16.msra.mxu0 %v623
      %709 = vmatprep.subr.bf16.mxu0 0
      %710 = vmatpush1.bf16.msra.mxu0 %v624
      %711 = vmatprep.subr.bf16.mxu0 0
      %712 = vmatpush1.bf16.msra.mxu0 %v625
      %713 = vmatprep.subr.bf16.mxu0 0
      %714 = vmatpush1.bf16.msra.mxu0 %v626
      %715 = vmatprep.subr.bf16.mxu0 0
      %716 = vmatpush1.bf16.msra.mxu0 %v627
      %717 = vmatprep.subr.bf16.mxu0 0
      %718 = vmatpush1.bf16.msra.mxu0 %v628
      %719 = vmatprep.subr.bf16.mxu0 0
      %720 = vmatpush1.bf16.msra.mxu0 %v629
      %721 = vmatprep.subr.bf16.mxu0 0
      %722 = vmatpush1.bf16.msra.mxu0 %v630
      %723 = vmatprep.mubr.bf16.mxu0 %v463
      %724 = vmatmul.mubr.bf16.gmra.mrb[0].mxu0 %v462
      %v725 = vpop.f32.mrb[0].mxu0
      %v726 = vadd.f32 %v444, %v725
      %v727 = vpop.f32.mrb[0].mxu0
      %v728 = vpop.f32.mrb[0].mxu0
      %v729 = vadd.f32 %v444, %v728
      %v730 = vpop.f32.mrb[0].mxu0
      %731 = vdwg.mxu0
      %732 = vmatprep.subr.bf16.mxu0 0
      %733 = vmatpush1.bf16.msra.mxu0 %v631
      %734 = vmatprep.subr.bf16.mxu0 0
      %735 = vmatpush1.bf16.msra.mxu0 %v632
      %736 = vmatprep.subr.bf16.mxu0 0
      %737 = vmatpush1.bf16.msra.mxu0 %v633
      %738 = vmatprep.subr.bf16.mxu0 0
      %739 = vmatpush1.bf16.msra.mxu0 %v634
      %740 = vmatprep.subr.bf16.mxu0 0
      %741 = vmatpush1.bf16.msra.mxu0 %v635
      %742 = vmatprep.subr.bf16.mxu0 0
      %743 = vmatpush1.bf16.msra.mxu0 %v636
      %744 = vmatprep.subr.bf16.mxu0 0
      %745 = vmatpush1.bf16.msra.mxu0 %v637
      %746 = vmatprep.subr.bf16.mxu0 0
      %747 = vmatpush1.bf16.msra.mxu0 %v638
      %748 = vmatprep.subr.bf16.mxu0 0
      %749 = vmatpush1.bf16.msra.mxu0 %v639
      %750 = vmatprep.subr.bf16.mxu0 0
      %751 = vmatpush1.bf16.msra.mxu0 %v640
      %752 = vmatprep.subr.bf16.mxu0 0
      %753 = vmatpush1.bf16.msra.mxu0 %v641
      %754 = vmatprep.subr.bf16.mxu0 0
      %755 = vmatpush1.bf16.msra.mxu0 %v642
      %756 = vmatprep.subr.bf16.mxu0 0
      %757 = vmatpush1.bf16.msra.mxu0 %v643
      %758 = vmatprep.subr.bf16.mxu0 0
      %759 = vmatpush1.bf16.msra.mxu0 %v644
      %760 = vmatprep.subr.bf16.mxu0 0
      %761 = vmatpush1.bf16.msra.mxu0 %v645
      %762 = vmatprep.subr.bf16.mxu0 0
      %763 = vmatpush1.bf16.msra.mxu0 %v646
      %764 = vmatprep.mubr.bf16.mxu0 %v465
      %765 = vmatmul.mubr.bf16.gmra.mrb[0].mxu0 %v464
      %v766 = vpop.f32.mrb[0].mxu0
      %v767 = vadd.f32 %v726, %v766
      %v768 = vpop.f32.mrb[0].mxu0
      %v769 = vpop.f32.mrb[0].mxu0
      %v770 = vadd.f32 %v729, %v769
      %v771 = vpop.f32.mrb[0].mxu0
      %772 = vdwg.mxu0
      %773 = vmatprep.subr.bf16.mxu0 0
      %774 = vmatpush1.bf16.msra.mxu0 %v647
      %775 = vmatprep.subr.bf16.mxu0 0
      %776 = vmatpush1.bf16.msra.mxu0 %v648
      %777 = vmatprep.subr.bf16.mxu0 0
      %778 = vmatpush1.bf16.msra.mxu0 %v649
      %779 = vmatprep.subr.bf16.mxu0 0
      %780 = vmatpush1.bf16.msra.mxu0 %v650
      %781 = vmatprep.subr.bf16.mxu0 0
      %782 = vmatpush1.bf16.msra.mxu0 0
      %783 = vmatprep.subr.bf16.mxu0 0
      %784 = vmatpush1.bf16.msra.mxu0 0
      %785 = vmatprep.subr.bf16.mxu0 0
      %786 = vmatpush1.bf16.msra.mxu0 0
      %787 = vmatprep.subr.bf16.mxu0 0
      %788 = vmatpush1.bf16.msra.mxu0 0
      %789 = vmatprep.subr.bf16.mxu0 0
      %790 = vmatpush1.bf16.msra.mxu0 0
      %791 = vmatprep.subr.bf16.mxu0 0
      %792 = vmatpush1.bf16.msra.mxu0 0
      %793 = vmatprep.subr.bf16.mxu0 0
      %794 = vmatpush1.bf16.msra.mxu0 0
      %795 = vmatprep.subr.bf16.mxu0 0
      %796 = vmatpush1.bf16.msra.mxu0 0
      %797 = vmatprep.subr.bf16.mxu0 0
      %798 = vmatpush1.bf16.msra.mxu0 0
      %799 = vmatprep.subr.bf16.mxu0 0
      %800 = vmatpush1.bf16.msra.mxu0 0
      %801 = vmatprep.subr.bf16.mxu0 0
      %802 = vmatpush1.bf16.msra.mxu0 0
      %803 = vmatprep.subr.bf16.mxu0 0
      %804 = vmatpush1.bf16.msra.mxu0 0
      %805 = vmatprep.mubr.bf16.mxu0 0
      %806 = vmatmul.mubr.bf16.gmra.mrb[0].mxu0 %v689
      %v807 = vpop.f32.mrb[0].mxu0
      %v808 = vadd.f32 %v767, %v807
      %v809 = vpop.f32.mrb[0].mxu0
      %v810 = vpop.f32.mrb[0].mxu0
      %v811 = vadd.f32 %v770, %v810
      %v812 = vpop.f32.mrb[0].mxu0
      %813 = vdwg.mxu0
      %v814 = vmax.f32 %v808, 0.0
      %v815 = vmax.f32 %v811, 0.0
      %v816 = vld [vmem:[%s1] sm:$0xff]
      %v817 = vld [vmem:[%s1 + $0x8] sm:$0xff]
      %v818 = vmul.f32 %v814, %v816
      %v819 = vmul.f32 %v815, %v817
      %v820 = vpack.c.bf16 %v819, %v818
      %v821 = vld [vmem:[%s4] sm:$0xf]
      %v822 = vld [vmem:[%s4 + $0x4] sm:$0xf]
      %v823 = vld [vmem:[%s4 + $0x8] sm:$0xf]
      %v824 = vld [vmem:[%s4 + $0xc] sm:$0xf]
      %v825 = vld [vmem:[%s4 + $0x10] sm:$0xf]
      %v826 = vld [vmem:[%s4 + $0x14] sm:$0xf]
      %v827 = vld [vmem:[%s4 + $0x18] sm:$0xf]
      %v828 = vld [vmem:[%s4 + $0x1c] sm:$0xf]
      %v829 = vld [vmem:[%s4 + $0x20] sm:$0xf]
      %v830 = vld [vmem:[%s4 + $0x24] sm:$0xf]
      %v831 = vld [vmem:[%s4 + $0x28] sm:$0xf]
      %v832 = vld [vmem:[%s4 + $0x2c] sm:$0xf]
      %v833 = vld [vmem:[%s4 + $0x30] sm:$0xf]
      %v834 = vld [vmem:[%s4 + $0x34] sm:$0xf]
      %v835 = vld [vmem:[%s4 + $0x38] sm:$0xf]
      %v836 = vld [vmem:[%s4 + $0x3c] sm:$0xf]
      %v837 = vld [vmem:[%s5] sm:$0x1]
      %v839 = vlaneseq
      %v840 = vshrl.u32 %v839, 7
      %v841 = vsub.s32 0, %v840
      %v842 = vrot.slane %v837, %v841
      %v860 = vunpack.c.l.b16 %v821
      %v861 = vunpack.c.l.b16 %v822
      %v862 = vunpack.c.l.b16 %v823
      %v863 = vunpack.c.l.b16 %v824
      %v864 = vunpack.c.l.b16 %v825
      %v865 = vunpack.c.l.b16 %v826
      %v866 = vunpack.c.l.b16 %v827
      %v867 = vunpack.c.l.b16 %v828
      %v868 = vunpack.c.l.b16 %v829
      %v869 = vunpack.c.l.b16 %v830
      %v870 = vunpack.c.l.b16 %v831
      %v871 = vunpack.c.l.b16 %v832
      %v872 = vunpack.c.l.b16 %v833
      %v873 = vunpack.c.l.b16 %v834
      %v874 = vunpack.c.l.b16 %v835
      %v875 = vunpack.c.l.b16 %v836
      %v876 = vpack.c.b16 %v861, %v860
      %v877 = vpack.c.b16 %v863, %v862
      %v878 = vpack.c.b16 %v865, %v864
      %v879 = vpack.c.b16 %v867, %v866
      %v880 = vpack.c.b16 %v869, %v868
      %v881 = vpack.c.b16 %v871, %v870
      %v882 = vpack.c.b16 %v873, %v872
      %v883 = vpack.c.b16 %v875, %v874
      %892 = vmatprep.subr.bf16.mxu0 0
      %893 = vmatpush1.bf16.msra.mxu0 %v876
      %894 = vmatprep.subr.bf16.mxu0 0
      %895 = vmatpush1.bf16.msra.mxu0 %v877
      %896 = vmatprep.subr.bf16.mxu0 0
      %897 = vmatpush1.bf16.msra.mxu0 %v878
      %898 = vmatprep.subr.bf16.mxu0 0
      %899 = vmatpush1.bf16.msra.mxu0 %v879
      %900 = vmatprep.subr.bf16.mxu0 0
      %901 = vmatpush1.bf16.msra.mxu0 %v880
      %902 = vmatprep.subr.bf16.mxu0 0
      %903 = vmatpush1.bf16.msra.mxu0 %v881
      %904 = vmatprep.subr.bf16.mxu0 0
      %905 = vmatpush1.bf16.msra.mxu0 %v882
      %906 = vmatprep.subr.bf16.mxu0 0
      %907 = vmatpush1.bf16.msra.mxu0 %v883
      %908 = vmatprep.subr.bf16.mxu0 0
      %909 = vmatpush1.bf16.msra.mxu0 0
      %910 = vmatprep.subr.bf16.mxu0 0
      %911 = vmatpush1.bf16.msra.mxu0 0
      %912 = vmatprep.subr.bf16.mxu0 0
      %913 = vmatpush1.bf16.msra.mxu0 0
      %914 = vmatprep.subr.bf16.mxu0 0
      %915 = vmatpush1.bf16.msra.mxu0 0
      %916 = vmatprep.subr.bf16.mxu0 0
      %917 = vmatpush1.bf16.msra.mxu0 0
      %918 = vmatprep.subr.bf16.mxu0 0
      %919 = vmatpush1.bf16.msra.mxu0 0
      %920 = vmatprep.subr.bf16.mxu0 0
      %921 = vmatpush1.bf16.msra.mxu0 0
      %922 = vmatprep.subr.bf16.mxu0 0
      %923 = vmatpush1.bf16.msra.mxu0 0
      %924 = vmatprep.mubr.bf16.mxu0 0
      %925 = vmatmul.mubr.bf16.gmra.mrb[0].mxu0 %v820
      %v926 = vpop.f32.mrb[0].mxu0
      %v927 = vadd.f32 %v842, %v926
      %v928 = vpop.f32.mrb[0].mxu0
      %v929 = vpop.f32.mrb[0].mxu0
      %v930 = vadd.f32 %v842, %v929
      %v931 = vpop.f32.mrb[0].mxu0
      %932 = vdwg.mxu0
      %v933 = vmax.f32 %v927, 0.0
      %v934 = vmax.f32 %v930, 0.0
      %v935 = vpack.c.bf16 %v934, %v933
      %v936 = vld [vmem:[%s6] sm:$0xf]
      %v937 = vld [vmem:[%s6 + $0x4] sm:$0xf]
      %v938 = vld [vmem:[%s7] sm:$0x1]
      %v940 = vlaneseq
      %v941 = vshrl.u32 %v940, 7
      %v942 = vsub.s32 0, %v941
      %v943 = vrot.slane %v938, %v942
      %v947 = vunpack.c.l.b16 %v936
      %v948 = vunpack.c.l.b16 %v937
      %v949 = vpack.c.b16 %v948, %v947
      %vm951 = vcmask 130048
      %v953 = vsel %vm951, %v935, 0
      %955 = vmatprep.subr.bf16.mxu0 0
      %956 = vmatpush1.bf16.msra.mxu0 %v949
      %957 = vmatprep.subr.bf16.mxu0 0
      %958 = vmatpush1.bf16.msra.mxu0 0
      %959 = vmatprep.subr.bf16.mxu0 0
      %960 = vmatpush1.bf16.msra.mxu0 0
      %961 = vmatprep.subr.bf16.mxu0 0
      %962 = vmatpush1.bf16.msra.mxu0 0
      %963 = vmatprep.subr.bf16.mxu0 0
      %964 = vmatpush1.bf16.msra.mxu0 0
      %965 = vmatprep.subr.bf16.mxu0 0
      %966 = vmatpush1.bf16.msra.mxu0 0
      %967 = vmatprep.subr.bf16.mxu0 0
      %968 = vmatpush1.bf16.msra.mxu0 0
      %969 = vmatprep.subr.bf16.mxu0 0
      %970 = vmatpush1.bf16.msra.mxu0 0
      %971 = vmatprep.subr.bf16.mxu0 0
      %972 = vmatpush1.bf16.msra.mxu0 0
      %973 = vmatprep.subr.bf16.mxu0 0
      %974 = vmatpush1.bf16.msra.mxu0 0
      %975 = vmatprep.subr.bf16.mxu0 0
      %976 = vmatpush1.bf16.msra.mxu0 0
      %977 = vmatprep.subr.bf16.mxu0 0
      %978 = vmatpush1.bf16.msra.mxu0 0
      %979 = vmatprep.subr.bf16.mxu0 0
      %980 = vmatpush1.bf16.msra.mxu0 0
      %981 = vmatprep.subr.bf16.mxu0 0
      %982 = vmatpush1.bf16.msra.mxu0 0
      %983 = vmatprep.subr.bf16.mxu0 0
      %984 = vmatpush1.bf16.msra.mxu0 0
      %985 = vmatprep.subr.bf16.mxu0 0
      %986 = vmatpush1.bf16.msra.mxu0 0
      %987 = vmatprep.mubr.bf16.mxu0 0
      %988 = vmatmul.mubr.bf16.gmra.mrb[0].mxu0 %v953
      %v989 = vpop.f32.mrb[0].mxu0
      %v990 = vadd.f32 %v943, %v989
      %v991 = vpop.f32.mrb[0].mxu0
      %v992 = vpop.f32.mrb[0].mxu0
      %v993 = vadd.f32 %v943, %v992
      %v994 = vpop.f32.mrb[0].mxu0
      %995 = vdwg.mxu0
      %v996 = vmax.f32 %v990, 0.0
      %v997 = vmax.f32 %v993, 0.0
      %v998 = vpack.c.bf16 %v997, %v996
      %v999 = vld [vmem:[%s8] sm:$0xf]
      %v1000 = vld [vmem:[%s8 + $0x4] sm:$0xf]
      %v1001 = vld [vmem:[%s9] sm:$0x1]
      %v1003 = vlaneseq
      %v1004 = vshrl.u32 %v1003, 7
      %v1005 = vsub.s32 0, %v1004
      %v1006 = vrot.slane %v1001, %v1005
      %v1010 = vunpack.c.l.b16 %v999
      %v1011 = vunpack.c.l.b16 %v1000
      %v1012 = vpack.c.b16 %v1011, %v1010
      %v1015 = vsel %vm951, %v998, 0
      %1017 = vmatprep.subr.bf16.mxu0 0
      %1018 = vmatpush1.bf16.msra.mxu0 %v1012
      %1019 = vmatprep.subr.bf16.mxu0 0
      %1020 = vmatpush1.bf16.msra.mxu0 0
      %1021 = vmatprep.subr.bf16.mxu0 0
      %1022 = vmatpush1.bf16.msra.mxu0 0
      %1023 = vmatprep.subr.bf16.mxu0 0
      %1024 = vmatpush1.bf16.msra.mxu0 0
      %1025 = vmatprep.subr.bf16.mxu0 0
      %1026 = vmatpush1.bf16.msra.mxu0 0
      %1027 = vmatprep.subr.bf16.mxu0 0
      %1028 = vmatpush1.bf16.msra.mxu0 0
      %1029 = vmatprep.subr.bf16.mxu0 0
      %1030 = vmatpush1.bf16.msra.mxu0 0
      %1031 = vmatprep.subr.bf16.mxu0 0
      %1032 = vmatpush1.bf16.msra.mxu0 0
      %1033 = vmatprep.subr.bf16.mxu0 0
      %1034 = vmatpush1.bf16.msra.mxu0 0
      %1035 = vmatprep.subr.bf16.mxu0 0
      %1036 = vmatpush1.bf16.msra.mxu0 0
      %1037 = vmatprep.subr.bf16.mxu0 0
      %1038 = vmatpush1.bf16.msra.mxu0 0
      %1039 = vmatprep.subr.bf16.mxu0 0
      %1040 = vmatpush1.bf16.msra.mxu0 0
      %1041 = vmatprep.subr.bf16.mxu0 0
      %1042 = vmatpush1.bf16.msra.mxu0 0
      %1043 = vmatprep.subr.bf16.mxu0 0
      %1044 = vmatpush1.bf16.msra.mxu0 0
      %1045 = vmatprep.subr.bf16.mxu0 0
      %1046 = vmatpush1.bf16.msra.mxu0 0
      %1047 = vmatprep.subr.bf16.mxu0 0
      %1048 = vmatpush1.bf16.msra.mxu0 0
      %1049 = vmatprep.mubr.bf16.mxu0 0
      %1050 = vmatmul.mubr.bf16.gmra.mrb[0].mxu0 %v1015
      %v1051 = vpop.f32.mrb[0].mxu0
      %v1052 = vadd.f32 %v1006, %v1051
      %v1053 = vpop.f32.mrb[0].mxu0
      %v1054 = vpop.f32.mrb[0].mxu0
      %v1055 = vadd.f32 %v1006, %v1054
      %v1056 = vpop.f32.mrb[0].mxu0
      %1057 = vdwg.mxu0
      %vm1058 = vcmask 97280
      %1059 = vst.msk [vmem:[%s359] sm:$0xff] %vm1058, %v1052
      %1060 = vst.msk [vmem:[%s359 + $0x8] sm:$0xff] %vm1058, %v1055
      %p1061 = scmp.lt.s32.totalorder %s21, 1
      %s1062 = scalar_select %p1061, %s21, 1
      %s1063 = smul.addr %s1062, 2
      %s1064 = smul.addr %s1063, 8
      %s1065 = scalar_lea.vmem %s10, %s1064
      // Predicated region
      $region61: #{build_detector_forward.1} parent=59 // pred_check
        %p1066 = pneg %p254
      $region62: #{build_detector_forward.1} parent=59 // pred_check_branch
        %1068 = sbr.rel (%p1066) target = $region64
      $region63: #{build_detector_forward.1} parent=59 // pred_region
        _
      $region64: #{build_detector_forward.1} parent=59 // pred_fallthru
        _
    $region60: #{build_detector_forward.1} parent=5 // pred_fallthru
      _
    %p1069 = scmp.le.s32.totalorder 2, %s16
    // Predicated region
    $region65: #{build_detector_forward.1} parent=5 // pred_check
      %p1070 = pneg %p1069
    $region66: #{build_detector_forward.1} parent=5 // pred_check_branch
      %1072 = sbr.rel (%p1070) target = $region68
    $region67: #{build_detector_forward.1} parent=5 // pred_region
      %s1073 = ssub.s32 %s16, 2
      // Predicated region
      $region69: #{build_detector_forward.1} parent=67 // pred_check
        %p1074 = pneg %p260
      $region70: #{build_detector_forward.1} parent=67 // pred_check_branch
        %1076 = sbr.rel (%p1074) target = $region72
      $region71: #{build_detector_forward.1} parent=67 // pred_region
        %p1077 = scmp.lt.s32.totalorder %s22, 1
        %s1078 = scalar_select %p1077, %s22, 1
        %s1079 = smul.addr %s1078, 2
        %s1080 = smul.addr %s1079, 8
        %s1081 = scalar_lea.vmem %s10, %s1080
      $region72: #{build_detector_forward.1} parent=67 // pred_fallthru
        _
    $region68: #{build_detector_forward.1} parent=5 // pred_fallthru
      _
  $region6: #{build_detector_forward.1} parent=0 // loop_footer
    %s20 = sadd.s32 1, %s16
  $region7: #{build_detector_forward.1} parent=0 // loop_footer_branch
    %15 = sbr.rel target = $region3
  $region8: #{build_detector_forward.1} parent=0 // loop_exit
    _

</llo_original>
